<compile_context>
chip_gen: v5e
topology: v5e:2x2
jax: 0.10.0
libtpu: 0.0.40
codegen_flags: <defaults>
</compile_context>

<pallas_src>
import functools

import jax
import jax.numpy as jnp
import numpy as np
from jax.experimental import pallas as pl
from jax.experimental.pallas import tpu as pltpu


def _detect_kernel(*refs, with_raw):
    """One grid step = one (batch, row-tile, anchor).

    x_ref    : (TM, Cin)  flattened NHWC input rows (matmul dtype, e.g. bf16)
    w_ref    : (Cin, no)  this anchor's slice of the 1x1-conv weight
    b_ref    : (1,  no)   this anchor's bias
    goff_ref : (TM, 2)    per-row [(gx-0.5)*stride, (gy-0.5)*stride]
    colA_ref : (1,  no)   linear decode coeff (2*stride / 0 / 1)
    colB_ref : (1,  no)   quadratic decode coeff (4*anchor_w/h on cols 2-3)
    code_ref : (1,  no)   0 -> add gx offset, 1 -> add gy offset, else 0
    raw_ref  : (TM, no)   raw conv output  (only when with_raw)
    dec_ref  : (TM, no)   decoded output
    """
    if with_raw:
        (x_ref, w_ref, b_ref, goff_ref, colA_ref, colB_ref, code_ref,
         raw_ref, dec_ref) = refs
    else:
        (x_ref, w_ref, b_ref, goff_ref, colA_ref, colB_ref, code_ref,
         dec_ref) = refs
        raw_ref = None

    acc = jnp.dot(x_ref[...], w_ref[...], preferred_element_type=jnp.float32)
    acc = acc + b_ref[...]
    if raw_ref is not None:
        raw_ref[...] = acc.astype(raw_ref.dtype)

    # sigmoid(acc) = 0.5 * tanh(0.5*acc) + 0.5  -> one EUP push per element.
    y = 0.5 * jnp.tanh(0.5 * acc) + 0.5

    code = code_ref[...]                                   # (1, no) int32
    gx = goff_ref[:, 0:1]                                  # (TM, 1)
    gy = goff_ref[:, 1:2]
    g = jnp.where(code == 0, gx, jnp.where(code == 1, gy, 0.0))
    dec = y * (colA_ref[...] + y * colB_ref[...]) + g
    dec_ref[...] = dec.astype(dec_ref.dtype)


def _choose_row_tiling(S, target):
    """Pick (tm, S_pad): tm a multiple of 16 (bf16 sublane packing) dividing
    S_pad.  Prefers an exact divisor of S (no padding); otherwise pads S to the
    smallest S_pad that keeps roughly `target`-sized, equal tiles."""
    t = min(target, S)
    t -= t % 16
    while t >= 16:
        if S % t == 0:
            return t, S
        t -= 16
    # No 16-multiple divisor of S <= target: pad the row axis instead of
    # collapsing to a single un-pipelined / oddly-shaped tile.
    n_tiles = max(1, -(-S // target))
    tm = -(-(-(-S // n_tiles)) // 16) * 16
    tm = max(16, tm)
    s_pad = -(-S // tm) * tm
    return tm, s_pad


def detect_scale(x_nchw, w, b, anchors_i, stride, na, no, *,
                 tm_target=1024, matmul_dtype=jnp.bfloat16,
                 raw_dtype=jnp.bfloat16, dec_dtype=jnp.float32,
                 with_raw=True):
    """Run one detection scale.  Returns (raw5, z):
    raw5: (bs, na, ny, nx, no)  (matches PyTorch x[i]; None if with_raw=False)
    z   : (bs, na*ny*nx, no)    (matches PyTorch z[i])
    """
    bs, cin, ny, nx = x_nchw.shape
    S = ny * nx
    f32 = jnp.float32
    stride = float(stride)

    # --- plain-JAX glue: layout plumbing (small vs. the big (M, no) outputs) --
    # TODO(synk): have the producing conv emit NHWC (or fuse this transpose +
    # cast into it); on a memory-bound op this extra activation pass is pure
    # overhead.
    x3 = jnp.transpose(x_nchw, (0, 2, 3, 1)).reshape(bs, S, cin)
    x3 = x3.astype(matmul_dtype)
    wt = w.reshape(na, no, cin).transpose(0, 2, 1).astype(matmul_dtype)  # (na,Cin,no)
    b3 = b.reshape(na, 1, no).astype(f32)

    # Per-row grid offsets with "-0.5, *stride" folded in; NOT batch-replicated.
    yy, xx = jnp.meshgrid(jnp.arange(ny, dtype=f32),
                          jnp.arange(nx, dtype=f32), indexing="ij")
    goff = (jnp.stack([xx, yy], axis=-1).reshape(1, S, 2) - 0.5) * stride

    # Per-column decode tables:  dec = y*(colA + y*colB) + G
    colA = jnp.ones((1, no), f32)
    colA = colA.at[0, 0:2].set(2.0 * stride).at[0, 2:4].set(0.0)
    colB = jnp.zeros((na, 1, no), f32)
    colB = colB.at[:, 0, 2].set(4.0 * anchors_i[:, 0])
    colB = colB.at[:, 0, 3].set(4.0 * anchors_i[:, 1])
    code = jnp.full((1, no), 2, jnp.int32).at[0, 0].set(0).at[0, 1].set(1)

    # --- Pallas kernel --------------------------------------------------------
    tm, s_pad = _choose_row_tiling(S, tm_target)
    if s_pad != S:
        pad = s_pad - S
        x3 = jnp.pad(x3, ((0, 0), (0, pad), (0, 0)))
        goff = jnp.pad(goff, ((0, 0), (0, pad), (0, 0)))

    # Anchor innermost: the x row-tile (index map ignores ai) stays resident in
    # VMEM across all na anchors instead of being re-DMA'd per anchor.
    grid = (bs, s_pad // tm, na)

    out_shapes = []
    out_specs = []
    if with_raw:
        out_shapes.append(jax.ShapeDtypeStruct((bs, na, s_pad, no), raw_dtype))
        out_specs.append(pl.BlockSpec((None, None, tm, no),
                                      lambda bi, i, ai: (bi, ai, i, 0)))
    out_shapes.append(jax.ShapeDtypeStruct((bs, na, s_pad, no), dec_dtype))
    out_specs.append(pl.BlockSpec((None, None, tm, no),
                                  lambda bi, i, ai: (bi, ai, i, 0)))

    outs = pl.pallas_call(
        functools.partial(_detect_kernel, with_raw=with_raw),
        out_shape=tuple(out_shapes),
        grid_spec=pltpu.PrefetchScalarGridSpec(
            num_scalar_prefetch=0,
            grid=grid,
            in_specs=[
                pl.BlockSpec((None, tm, cin), lambda bi, i, ai: (bi, i, 0)),
                pl.BlockSpec((None, cin, no), lambda bi, i, ai: (ai, 0, 0)),
                pl.BlockSpec((None, 1, no),   lambda bi, i, ai: (ai, 0, 0)),
                pl.BlockSpec((None, tm, 2),   lambda bi, i, ai: (0, i, 0)),
                pl.BlockSpec((1, no),         lambda bi, i, ai: (0, 0)),
                pl.BlockSpec((None, 1, no),   lambda bi, i, ai: (ai, 0, 0)),
                pl.BlockSpec((1, no),         lambda bi, i, ai: (0, 0)),
            ],
            out_specs=tuple(out_specs),
        ),
        compiler_params=pltpu.CompilerParams(
            dimension_semantics=("parallel", "parallel", "parallel")),
    )(x3, wt, b3, goff, colA, colB, code)

    if with_raw:
        raw, dec = outs
    else:
        dec = outs[0] if isinstance(outs, (tuple, list)) else outs
        raw = None

    # --- plain-JAX glue: (reshapes; slice only if we padded) ------------------
    if s_pad != S:
        dec = dec[:, :, :S, :]
        if raw is not None:
            raw = raw[:, :, :S, :]
    z = dec.reshape(bs, na * S, no)
    raw5 = raw.reshape(bs, na, ny, nx, no) if raw is not None else None
    return raw5, z


def detect_forward(xs, params, anchors, strides, na, no, *,
                   raw_dtype=jnp.bfloat16, with_raw=True):
    """Inference-mode Detect.forward: returns (cat(z, 1), x_list)."""
    # TODO(synk): fuse all nl scales into one pallas_call (scalar-prefetch
    # per-scale row offsets / weight bases) to amortize launch + pipeline
    # warm-up when the small feature maps are only 1-2 grid steps.
    x_out, z_out = [], []
    for i, x in enumerate(xs):
        w, b = params[i]
        raw5, z = detect_scale(x, w, b, anchors[i], strides[i], na, no,
                               raw_dtype=raw_dtype, with_raw=with_raw)
        x_out.append(raw5)
        z_out.append(z)
    return jnp.concatenate(z_out, axis=1), x_out


def detect_reference(xs, params, anchors, strides, na, no):
    """Pure-JAX f32 reference mirroring the PyTorch forward semantics."""
    x_out, z_out = [], []
    for i, x in enumerate(xs):
        w, b = params[i]
        bs, cin, ny, nx = x.shape
        cout = na * no
        y = jnp.einsum("bchw,oc->bohw", x, w.reshape(cout, cin)) \
            + b.reshape(1, cout, 1, 1)
        y = y.reshape(bs, na, no, ny, nx).transpose(0, 1, 3, 4, 2)
        x_out.append(y)
        s = 1.0 / (1.0 + jnp.exp(-y))
        yy, xx = jnp.meshgrid(jnp.arange(ny), jnp.arange(nx), indexing="ij")
        grid = jnp.stack([xx, yy], -1).astype(jnp.float32).reshape(1, 1, ny, nx, 2)
        ag = anchors[i].reshape(1, na, 1, 1, 2)
        xy = (s[..., 0:2] * 2.0 - 0.5 + grid) * strides[i]
        wh = (s[..., 2:4] * 2.0) ** 2 * ag
        dec = jnp.concatenate([xy, wh, s[..., 4:]], -1)
        z_out.append(dec.reshape(bs, -1, no))
    return jnp.concatenate(z_out, 1), x_out


if __name__ == "__main__":
    # Small Detect config: nc=3 classes, angle=180 (hard-coded in the module),
    # nl=2 scales, na=2 anchors per scale.
    nc = 3
    angle = 180
    no = nc + 5 + angle              # 188
    anchors_cfg = ((10, 13, 16, 30), (30, 61, 62, 45))
    nl = len(anchors_cfg)
    na = len(anchors_cfg[0]) // 2
    ch = (8, 16)
    strides = (8.0, 16.0)            # Detect.stride is set externally in YOLO
    bs = 2
    spatial = (8, 4)                 # ny = nx per scale

    anchors = jnp.asarray(anchors_cfg, dtype=jnp.float32).reshape(nl, na, 2)

    key = jax.random.PRNGKey(0)
    params, xs = [], []
    for i in range(nl):
        key, kw, kb, kx = jax.random.split(key, 4)
        cout = na * no
        w = jax.random.normal(kw, (cout, ch[i], 1, 1), jnp.float32) * 0.05
        b = jax.random.normal(kb, (cout,), jnp.float32) * 0.05
        params.append((w, b))
        xs.append(jax.random.normal(
            kx, (bs, ch[i], spatial[i], spatial[i]), jnp.float32))

    z_cat, x_list = detect_forward(xs, params, anchors, strides, na, no)
    jax.block_until_ready(z_cat)
    for x in x_list:
        jax.block_until_ready(x)

    # Sanity-check against the pure-f32 reference.  Tolerances account for the
    # bf16 matmul operands and the bf16 raw-output storage; the decoded output
    # is f32 with an exact (tanh-based) sigmoid.
    z_ref, x_ref = detect_reference(xs, params, anchors, strides, na, no)
    np.testing.assert_allclose(np.asarray(z_cat), np.asarray(z_ref),
                               rtol=2e-2, atol=5e-2)
    for a, b_ in zip(x_list, x_ref):
        np.testing.assert_allclose(np.asarray(a, dtype=np.float32),
                                   np.asarray(b_),
                                   rtol=2e-2, atol=3e-2)

    # Shape check vs. PyTorch semantics.
    total = sum(na * s * s for s in spatial)
    assert z_cat.shape == (bs, total, no)
    assert x_list[0].shape == (bs, na, spatial[0], spatial[0], no)

    print("KERNEL_OK")
</pallas_src>

<mosaic_0001>
module attributes {stable_mosaic.version = 11 : i64} {
  func.func @_detect_kernel(%arg0: i32, %arg1: i32, %arg2: i32, %arg3: memref<1x64x8xbf16, #tpu.memory_space<vmem>>, %arg4: memref<1x8x188xbf16, #tpu.memory_space<vmem>>, %arg5: memref<1x1x188xf32, #tpu.memory_space<vmem>>, %arg6: memref<1x64x2xf32, #tpu.memory_space<vmem>>, %arg7: memref<1x188xf32, #tpu.memory_space<vmem>>, %arg8: memref<1x1x188xf32, #tpu.memory_space<vmem>>, %arg9: memref<1x188xi32, #tpu.memory_space<vmem>>, %arg10: memref<1x1x64x188xbf16, #tpu.memory_space<vmem>>, %arg11: memref<1x1x64x188xf32, #tpu.memory_space<vmem>>) attributes {dimension_semantics = [#tpu.dimension_semantics<parallel>, #tpu.dimension_semantics<parallel>, #tpu.dimension_semantics<parallel>], iteration_bounds = array<i64: 2, 1, 2>, scalar_prefetch = 0 : i64, scratch_operands = 0 : i64, tpu.core_type = #tpu.core_type<tc>, window_params = [{transform_indices = @transform_0, window_bounds = array<i64: 1, 64, 8>}, {transform_indices = @transform_1, window_bounds = array<i64: 1, 8, 188>}, {transform_indices = @transform_2, window_bounds = array<i64: 1, 1, 188>}, {transform_indices = @transform_3, window_bounds = array<i64: 1, 64, 2>}, {pipeline_mode = #tpu.pipeline_mode<synchronous>, transform_indices = @transform_4, window_bounds = array<i64: 1, 188>}, {transform_indices = @transform_5, window_bounds = array<i64: 1, 1, 188>}, {pipeline_mode = #tpu.pipeline_mode<synchronous>, transform_indices = @transform_6, window_bounds = array<i64: 1, 188>}, {transform_indices = @transform_7, window_bounds = array<i64: 1, 1, 64, 188>}, {transform_indices = @transform_8, window_bounds = array<i64: 1, 1, 64, 188>}]} {
    %c0 = arith.constant 0 : index
    %c0_0 = arith.constant 0 : index
    %c0_1 = arith.constant 0 : index
    %0 = vector.load %arg3[%c0, %c0_0, %c0_1] : memref<1x64x8xbf16, #tpu.memory_space<vmem>>, vector<1x64x8xbf16>
    %1 = vector.shape_cast %0 : vector<1x64x8xbf16> to vector<64x8xbf16>
    %c0_2 = arith.constant 0 : index
    %c0_3 = arith.constant 0 : index
    %c0_4 = arith.constant 0 : index
    %2 = vector.load %arg4[%c0_2, %c0_3, %c0_4] : memref<1x8x188xbf16, #tpu.memory_space<vmem>>, vector<1x8x188xbf16>
    %3 = vector.shape_cast %2 : vector<1x8x188xbf16> to vector<8x188xbf16>
    %cst = arith.constant dense<0.000000e+00> : vector<64x188xf32>
    %4 = tpu.matmul %1, %3, %cst {dimension_numbers = #tpu.dot_dimension_numbers<[1], [0], [0], [1], [0, 0, 1, 1], [], []>} : vector<64x8xbf16>, vector<8x188xbf16>, vector<64x188xf32> -> vector<64x188xf32>
    %c0_5 = arith.constant 0 : index
    %c0_6 = arith.constant 0 : index
    %c0_7 = arith.constant 0 : index
    %5 = vector.load %arg5[%c0_5, %c0_6, %c0_7] : memref<1x1x188xf32, #tpu.memory_space<vmem>>, vector<1x1x188xf32>
    %6 = vector.shape_cast %5 : vector<1x1x188xf32> to vector<1x188xf32>
    %7 = vector.broadcast %6 : vector<1x188xf32> to vector<64x188xf32>
    %8 = arith.addf %4, %7 : vector<64x188xf32>
    %9 = arith.truncf %8 : vector<64x188xf32> to vector<64x188xbf16>
    %c0_8 = arith.constant 0 : index
    %c0_9 = arith.constant 0 : index
    %c0_10 = arith.constant 0 : index
    %c0_11 = arith.constant 0 : index
    %10 = vector.load %arg10[%c0_8, %c0_9, %c0_10, %c0_11] : memref<1x1x64x188xbf16, #tpu.memory_space<vmem>>, vector<1x1x64x188xbf16>
    %11 = vector.shape_cast %10 : vector<1x1x64x188xbf16> to vector<64x188xbf16>
    %12 = vector.shape_cast %9 : vector<64x188xbf16> to vector<1x1x64x188xbf16>
    tpu.vector_store %arg10[%c0_8, %c0_9, %c0_10, %c0_11], %12 {strides = array<i32>} : memref<1x1x64x188xbf16, #tpu.memory_space<vmem>>, vector<1x1x64x188xbf16>,
    %cst_12 = arith.constant 5.000000e-01 : f32
    %13 = vector.broadcast %cst_12 : f32 to vector<64x188xf32>
    %14 = arith.mulf %13, %8 : vector<64x188xf32>
    %15 = math.tanh %14 : vector<64x188xf32>
    %cst_13 = arith.constant 5.000000e-01 : f32
    %16 = vector.broadcast %cst_13 : f32 to vector<64x188xf32>
    %17 = arith.mulf %16, %15 : vector<64x188xf32>
    %cst_14 = arith.constant 5.000000e-01 : f32
    %18 = vector.broadcast %cst_14 : f32 to vector<64x188xf32>
    %19 = arith.addf %17, %18 : vector<64x188xf32>
    %c0_15 = arith.constant 0 : index
    %c0_16 = arith.constant 0 : index
    %20 = vector.load %arg9[%c0_15, %c0_16] : memref<1x188xi32, #tpu.memory_space<vmem>>, vector<1x188xi32>
    %c0_17 = arith.constant 0 : index
    %c0_18 = arith.constant 0 : index
    %c0_19 = arith.constant 0 : index
    %21 = vector.load %arg6[%c0_17, %c0_18, %c0_19] : memref<1x64x2xf32, #tpu.memory_space<vmem>>, vector<1x64x1xf32>
    %22 = vector.shape_cast %21 : vector<1x64x1xf32> to vector<64x1xf32>
    %c0_20 = arith.constant 0 : index
    %c0_21 = arith.constant 0 : index
    %c1 = arith.constant 1 : index
    %23 = vector.load %arg6[%c0_20, %c0_21, %c1] : memref<1x64x2xf32, #tpu.memory_space<vmem>>, vector<1x64x1xf32>
    %24 = vector.shape_cast %23 : vector<1x64x1xf32> to vector<64x1xf32>
    %c0_i32 = arith.constant 0 : i32
    %25 = vector.broadcast %c0_i32 : i32 to vector<1x188xi32>
    %26 = arith.cmpi eq, %20, %25 : vector<1x188xi32>
    %c1_i32 = arith.constant 1 : i32
    %27 = vector.broadcast %c1_i32 : i32 to vector<1x188xi32>
    %28 = arith.cmpi eq, %20, %27 : vector<1x188xi32>
    %cst_22 = arith.constant 0.000000e+00 : f32
    %29 = vector.shape_cast %28 : vector<1x188xi1> to vector<1x188xi1>
    %30 = vector.broadcast %29 : vector<1x188xi1> to vector<64x188xi1>
    %31 = vector.shape_cast %24 : vector<64x1xf32> to vector<64x1xf32>
    %32 = vector.broadcast %31 : vector<64x1xf32> to vector<64x188xf32>
    %33 = vector.broadcast %cst_22 : f32 to vector<64x188xf32>
    %34 = arith.select %30, %32, %33 : vector<64x188xi1>, vector<64x188xf32>
    %35 = vector.shape_cast %26 : vector<1x188xi1> to vector<1x188xi1>
    %36 = vector.broadcast %35 : vector<1x188xi1> to vector<64x188xi1>
    %37 = vector.shape_cast %22 : vector<64x1xf32> to vector<64x1xf32>
    %38 = vector.broadcast %37 : vector<64x1xf32> to vector<64x188xf32>
    %39 = arith.select %36, %38, %34 : vector<64x188xi1>, vector<64x188xf32>
    %c0_23 = arith.constant 0 : index
    %c0_24 = arith.constant 0 : index
    %40 = vector.load %arg7[%c0_23, %c0_24] : memref<1x188xf32, #tpu.memory_space<vmem>>, vector<1x188xf32>
    %c0_25 = arith.constant 0 : index
    %c0_26 = arith.constant 0 : index
    %c0_27 = arith.constant 0 : index
    %41 = vector.load %arg8[%c0_25, %c0_26, %c0_27] : memref<1x1x188xf32, #tpu.memory_space<vmem>>, vector<1x1x188xf32>
    %42 = vector.shape_cast %41 : vector<1x1x188xf32> to vector<1x188xf32>
    %43 = vector.broadcast %42 : vector<1x188xf32> to vector<64x188xf32>
    %44 = arith.mulf %19, %43 : vector<64x188xf32>
    %45 = vector.broadcast %40 : vector<1x188xf32> to vector<64x188xf32>
    %46 = arith.addf %45, %44 : vector<64x188xf32>
    %47 = arith.mulf %19, %46 : vector<64x188xf32>
    %48 = arith.addf %47, %39 : vector<64x188xf32>
    %c0_28 = arith.constant 0 : index
    %c0_29 = arith.constant 0 : index
    %c0_30 = arith.constant 0 : index
    %c0_31 = arith.constant 0 : index
    %49 = vector.load %arg11[%c0_28, %c0_29, %c0_30, %c0_31] : memref<1x1x64x188xf32, #tpu.memory_space<vmem>>, vector<1x1x64x188xf32>
    %50 = vector.shape_cast %49 : vector<1x1x64x188xf32> to vector<64x188xf32>
    %51 = vector.shape_cast %48 : vector<64x188xf32> to vector<1x1x64x188xf32>
    tpu.vector_store %arg11[%c0_28, %c0_29, %c0_30, %c0_31], %51 {strides = array<i32>} : memref<1x1x64x188xf32, #tpu.memory_space<vmem>>, vector<1x1x64x188xf32>,
    return
  }
  func.func @transform_0(%arg0: i32, %arg1: i32, %arg2: i32) -> (i32, i32, i32) {
    %c0_i32 = arith.constant 0 : i32
    %c0_i32_0 = arith.constant 0 : i32
    return %arg0, %arg1, %c0_i32 : i32, i32, i32
  }
  func.func @transform_1(%arg0: i32, %arg1: i32, %arg2: i32) -> (i32, i32, i32) {
    %c0_i32 = arith.constant 0 : i32
    %c0_i32_0 = arith.constant 0 : i32
    %c0_i32_1 = arith.constant 0 : i32
    return %arg2, %c0_i32, %c0_i32_0 : i32, i32, i32
  }
  func.func @transform_2(%arg0: i32, %arg1: i32, %arg2: i32) -> (i32, i32, i32) {
    %c0_i32 = arith.constant 0 : i32
    %c0_i32_0 = arith.constant 0 : i32
    %c0_i32_1 = arith.constant 0 : i32
    return %arg2, %c0_i32, %c0_i32_0 : i32, i32, i32
  }
  func.func @transform_3(%arg0: i32, %arg1: i32, %arg2: i32) -> (i32, i32, i32) {
    %c0_i32 = arith.constant 0 : i32
    %c0_i32_0 = arith.constant 0 : i32
    %c0_i32_1 = arith.constant 0 : i32
    return %c0_i32, %arg1, %c0_i32_0 : i32, i32, i32
  }
  func.func @transform_4(%arg0: i32, %arg1: i32, %arg2: i32) -> (i32, i32) {
    %c0_i32 = arith.constant 0 : i32
    %c0_i32_0 = arith.constant 0 : i32
    %c0_i32_1 = arith.constant 0 : i32
    return %c0_i32, %c0_i32_0 : i32, i32
  }
  func.func @transform_5(%arg0: i32, %arg1: i32, %arg2: i32) -> (i32, i32, i32) {
    %c0_i32 = arith.constant 0 : i32
    %c0_i32_0 = arith.constant 0 : i32
    %c0_i32_1 = arith.constant 0 : i32
    return %arg2, %c0_i32, %c0_i32_0 : i32, i32, i32
  }
  func.func @transform_6(%arg0: i32, %arg1: i32, %arg2: i32) -> (i32, i32) {
    %c0_i32 = arith.constant 0 : i32
    %c0_i32_0 = arith.constant 0 : i32
    %c0_i32_1 = arith.constant 0 : i32
    return %c0_i32, %c0_i32_0 : i32, i32
  }
  func.func @transform_7(%arg0: i32, %arg1: i32, %arg2: i32) -> (i32, i32, i32, i32) {
    %c0_i32 = arith.constant 0 : i32
    %c0_i32_0 = arith.constant 0 : i32
    return %arg0, %arg2, %arg1, %c0_i32 : i32, i32, i32, i32
  }
  func.func @transform_8(%arg0: i32, %arg1: i32, %arg2: i32) -> (i32, i32, i32, i32) {
    %c0_i32 = arith.constant 0 : i32
    %c0_i32_0 = arith.constant 0 : i32
    return %arg0, %arg2, %arg1, %c0_i32 : i32, i32, i32, i32
  }
}

</mosaic_0001>

<llo_original>
// kernel: tpu_custom_call.1
$region0: #{tpu_custom_call.1}
  #allocation0 [shape = 'u32[]', space=smem, size = 0x4, offset = 0x4, fixed_abs, tag = 'smem constant byte address 0x4 - core index']
  #allocation1 [shape = 'u32[72,128]{1,0:T(1,128)}', space=vmem, size = 0x9000, scoped, tag = 'internal scratch']
  %s0 = inlined_call_operand.vmem [shape: bf16[2,64,8], index: 0, kind: input, shape index: {}]
  %s1 = inlined_call_operand.vmem [shape: bf16[2,8,188], index: 1, kind: input, shape index: {}]
  %s2 = inlined_call_operand.vmem [shape: f32[2,1,188], index: 2, kind: input, shape index: {}]
  %s3 = inlined_call_operand.vmem [shape: f32[1,64,2], index: 3, kind: input, shape index: {}]
  %s4 = inlined_call_operand.vmem [shape: f32[1,188], index: 4, kind: input, shape index: {}]
  %s5 = inlined_call_operand.vmem [shape: f32[2,1,188], index: 5, kind: input, shape index: {}]
  %s6 = inlined_call_operand.vmem [shape: s32[1,188], index: 6, kind: input, shape index: {}]
  %s7 = inlined_call_operand.hbm [shape: bf16[2,2,64,188], index: 7, kind: output, shape index: {0}]
  %s8 = inlined_call_operand.hbm [shape: f32[2,2,64,188], index: 8, kind: output, shape index: {1}]
  %9 = xla_tuple %s7, %s8
  %s10 = sld [smem:[#allocation0]]
  $region69: #{tpu_custom_call.1} parent=0
    _
  %s12 = ssub.s32 1, %s10
  %s13 = scalar_select 0, %s12, %s10
  $region1: #{tpu_custom_call.1} parent=0
    #allocation2 [shape = 'u8[65536]{0}', space=vmem, size = 0x10000, scoped, tag = 'output window, operand 0']
    #allocation3 [shape = 's32[2]{0}', space=sflag, size = 0x8, scoped, tag = 'scoped memory for tpu_custom_call.1']
    #allocation4 [shape = 'u8[131072]{0}', space=vmem, size = 0x20000, scoped, tag = 'output window, operand 1']
    #allocation5 [shape = 's32[2]{0}', space=sflag, size = 0x8, scoped, tag = 'scoped memory for tpu_custom_call.1']
    %14 = vsyncpa [#allocation3], 0
    %s15 = scalar_lea.sflag [#allocation3], 1
    %16 = vsyncpa %s15, 0
    %17 = vsyncpa [#allocation5], 0
    %s18 = scalar_lea.sflag [#allocation5], 1
    %19 = vsyncpa %s18, 0
    loop: start=0, step=1, limit=6
    $region2: #{tpu_custom_call.1} parent=1 // loop_pre_header
      _
    $region3: #{tpu_custom_call.1} parent=1 // loop_header
      %s21 = sphi 0, %s25
      %p22 = scmp.ge.s32.totalorder %s21, 6
      %s28 = sphi 0, %s47
      %s29 = sphi 0, %s43
      %s30 = sphi 0, %s39
      %s31 = sphi 0, %s28
      %s32 = sphi 0, %s29
      %s33 = sphi 0, %s30
      %s34 = sphi 0, %s31
      %s35 = sphi 0, %s32
      %s36 = sphi 0, %s33
      %s52 = sphi 0, %s54
      %s55 = sphi 0, %s52
      %s56 = sphi 0, %s55
      %s72 = sphi 0, %s56
      %s78 = sphi 0, %s80
      %s81 = sphi 0, %s78
      %s82 = sphi 0, %s81
      %s98 = sphi 0, %s82
      %s104 = sphi 0, %s106
      %s107 = sphi 0, %s104
      %s108 = sphi 0, %s107
      %s124 = sphi 0, %s108
      %s130 = sphi 0, %s132
      %s133 = sphi 0, %s130
      %s134 = sphi 0, %s133
      %s150 = sphi 0, %s134
      %s154 = sphi 0, %s154
      %s156 = sphi 0, %s154
      %s157 = sphi 0, %s156
      %s171 = sphi 0, %s157
      %s177 = sphi 0, %s179
      %s180 = sphi 0, %s177
      %s181 = sphi 0, %s180
      %s197 = sphi 0, %s181
      %s201 = sphi 0, %s201
      %s203 = sphi 0, %s201
      %s204 = sphi 0, %s203
      %s218 = sphi 0, %s204
      %s228 = sphi 0, %s230
      %s231 = sphi 0, %s228
      %s232 = sphi 0, %s231
      %s248 = sphi 0, %s232
      %s258 = sphi 0, %s260
      %s261 = sphi 0, %s258
      %s262 = sphi 0, %s261
      %s278 = sphi 0, %s262
    $region4: #{tpu_custom_call.1} parent=1 // loop_header_branch
      %24 = sbr.rel (%p22) target = $region8
    $region5: #{tpu_custom_call.1} parent=1 // loop_body
      %s26 = ssub.s32 %s21, 1
      %s27 = ssub.s32 %s21, 2
      %s37 = sadd.s32 1, %s30
      %p38 = scmp.ge.s32.totalorder %s37, 2
      %s39 = scalar_select %p38, 0, %s37
      %s40 = sadd.s32 1, %s29
      %s41 = scalar_select %p38, %s40, %s29
      %p42 = scmp.ge.s32.totalorder %s41, 1
      %s43 = scalar_select %p42, 0, %s41
      %s44 = sadd.s32 1, %s28
      %s45 = scalar_select %p42, %s44, %s28
      %p46 = scmp.ge.s32.totalorder %s45, 2
      %s47 = scalar_select %p46, 0, %s45
      %s48 = ssub.s32 %s28, %s47
      %s49 = ssub.s32 %s29, %s43
      %s50 = sor.u32 %s48, %s49
      %p51 = scmp.eq.s32.totalorder %s50, 0
      %s53 = sadd.s32 %s52, 1
      %s54 = scalar_select %p51, %s52, %s53
      %p57 = pneg %p51
      %p58 = scmp.eq.s32.totalorder %s21, 3
      %p59 = por %p57, %p58
      %p60 = scmp.ne.s32.totalorder %s52, %s55
      %p61 = scmp.eq.s32.totalorder %s21, 0
      %p62 = por %p60, %p61
      %p63 = scmp.ne.s32.totalorder %s52, %s55
      %p64 = scmp.eq.s32.totalorder %s26, 3
      %p65 = por %p63, %p64
      %p66 = scmp.ne.s32.totalorder %s55, %s56
      %p67 = scmp.eq.s32.totalorder %s26, 0
      %p68 = por %p66, %p67
      %p69 = scmp.ne.s32.totalorder %s55, %s56
      %p70 = scmp.eq.s32.totalorder %s27, 3
      %p71 = por %p69, %p70
      %p73 = scmp.ne.s32.totalorder %s56, %s72
      %p74 = scmp.eq.s32.totalorder %s27, 0
      %p75 = por %p73, %p74
      %s76 = ssub.s32 %s30, %s39
      %p77 = scmp.eq.s32.totalorder %s76, 0
      %s79 = sadd.s32 %s78, 1
      %s80 = scalar_select %p77, %s78, %s79
      %p83 = pneg %p77
      %p84 = scmp.eq.s32.totalorder %s21, 3
      %p85 = por %p83, %p84
      %p86 = scmp.ne.s32.totalorder %s78, %s81
      %p87 = scmp.eq.s32.totalorder %s21, 0
      %p88 = por %p86, %p87
      %p89 = scmp.ne.s32.totalorder %s78, %s81
      %p90 = scmp.eq.s32.totalorder %s26, 3
      %p91 = por %p89, %p90
      %p92 = scmp.ne.s32.totalorder %s81, %s82
      %p93 = scmp.eq.s32.totalorder %s26, 0
      %p94 = por %p92, %p93
      %p95 = scmp.ne.s32.totalorder %s81, %s82
      %p96 = scmp.eq.s32.totalorder %s27, 3
      %p97 = por %p95, %p96
      %p99 = scmp.ne.s32.totalorder %s82, %s98
      %p100 = scmp.eq.s32.totalorder %s27, 0
      %p101 = por %p99, %p100
      %s102 = ssub.s32 %s30, %s39
      %p103 = scmp.eq.s32.totalorder %s102, 0
      %s105 = sadd.s32 %s104, 1
      %s106 = scalar_select %p103, %s104, %s105
      %p109 = pneg %p103
      %p110 = scmp.eq.s32.totalorder %s21, 3
      %p111 = por %p109, %p110
      %p112 = scmp.ne.s32.totalorder %s104, %s107
      %p113 = scmp.eq.s32.totalorder %s21, 0
      %p114 = por %p112, %p113
      %p115 = scmp.ne.s32.totalorder %s104, %s107
      %p116 = scmp.eq.s32.totalorder %s26, 3
      %p117 = por %p115, %p116
      %p118 = scmp.ne.s32.totalorder %s107, %s108
      %p119 = scmp.eq.s32.totalorder %s26, 0
      %p120 = por %p118, %p119
      %p121 = scmp.ne.s32.totalorder %s107, %s108
      %p122 = scmp.eq.s32.totalorder %s27, 3
      %p123 = por %p121, %p122
      %p125 = scmp.ne.s32.totalorder %s108, %s124
      %p126 = scmp.eq.s32.totalorder %s27, 0
      %p127 = por %p125, %p126
      %s128 = ssub.s32 %s29, %s43
      %p129 = scmp.eq.s32.totalorder %s128, 0
      %s131 = sadd.s32 %s130, 1
      %s132 = scalar_select %p129, %s130, %s131
      %p135 = pneg %p129
      %p136 = scmp.eq.s32.totalorder %s21, 3
      %p137 = por %p135, %p136
      %p138 = scmp.ne.s32.totalorder %s130, %s133
      %p139 = scmp.eq.s32.totalorder %s21, 0
      %p140 = por %p138, %p139
      %p141 = scmp.ne.s32.totalorder %s130, %s133
      %p142 = scmp.eq.s32.totalorder %s26, 3
      %p143 = por %p141, %p142
      %p144 = scmp.ne.s32.totalorder %s133, %s134
      %p145 = scmp.eq.s32.totalorder %s26, 0
      %p146 = por %p144, %p145
      %p147 = scmp.ne.s32.totalorder %s133, %s134
      %p148 = scmp.eq.s32.totalorder %s27, 3
      %p149 = por %p147, %p148
      %p151 = scmp.ne.s32.totalorder %s134, %s150
      %p152 = scmp.eq.s32.totalorder %s27, 0
      %p153 = por %p151, %p152
      %s155 = sadd.s32 %s154, 1
      %p158 = scmp.eq.s32.totalorder %s21, 3
      %p159 = scmp.ne.s32.totalorder %s154, %s156
      %p160 = scmp.eq.s32.totalorder %s21, 0
      %p161 = por %p159, %p160
      %p162 = scmp.ne.s32.totalorder %s154, %s156
      %p163 = scmp.eq.s32.totalorder %s26, 3
      %p164 = por %p162, %p163
      %p165 = scmp.ne.s32.totalorder %s156, %s157
      %p166 = scmp.eq.s32.totalorder %s26, 0
      %p167 = por %p165, %p166
      %p168 = scmp.ne.s32.totalorder %s156, %s157
      %p169 = scmp.eq.s32.totalorder %s27, 3
      %p170 = por %p168, %p169
      %p172 = scmp.ne.s32.totalorder %s157, %s171
      %p173 = scmp.eq.s32.totalorder %s27, 0
      %p174 = por %p172, %p173
      %s175 = ssub.s32 %s30, %s39
      %p176 = scmp.eq.s32.totalorder %s175, 0
      %s178 = sadd.s32 %s177, 1
      %s179 = scalar_select %p176, %s177, %s178
      %p182 = pneg %p176
      %p183 = scmp.eq.s32.totalorder %s21, 3
      %p184 = por %p182, %p183
      %p185 = scmp.ne.s32.totalorder %s177, %s180
      %p186 = scmp.eq.s32.totalorder %s21, 0
      %p187 = por %p185, %p186
      %p188 = scmp.ne.s32.totalorder %s177, %s180
      %p189 = scmp.eq.s32.totalorder %s26, 3
      %p190 = por %p188, %p189
      %p191 = scmp.ne.s32.totalorder %s180, %s181
      %p192 = scmp.eq.s32.totalorder %s26, 0
      %p193 = por %p191, %p192
      %p194 = scmp.ne.s32.totalorder %s180, %s181
      %p195 = scmp.eq.s32.totalorder %s27, 3
      %p196 = por %p194, %p195
      %p198 = scmp.ne.s32.totalorder %s181, %s197
      %p199 = scmp.eq.s32.totalorder %s27, 0
      %p200 = por %p198, %p199
      %s202 = sadd.s32 %s201, 1
      %p205 = scmp.eq.s32.totalorder %s21, 3
      %p206 = scmp.ne.s32.totalorder %s201, %s203
      %p207 = scmp.eq.s32.totalorder %s21, 0
      %p208 = por %p206, %p207
      %p209 = scmp.ne.s32.totalorder %s201, %s203
      %p210 = scmp.eq.s32.totalorder %s26, 3
      %p211 = por %p209, %p210
      %p212 = scmp.ne.s32.totalorder %s203, %s204
      %p213 = scmp.eq.s32.totalorder %s26, 0
      %p214 = por %p212, %p213
      %p215 = scmp.ne.s32.totalorder %s203, %s204
      %p216 = scmp.eq.s32.totalorder %s27, 3
      %p217 = por %p215, %p216
      %p219 = scmp.ne.s32.totalorder %s204, %s218
      %p220 = scmp.eq.s32.totalorder %s27, 0
      %p221 = por %p219, %p220
      %s222 = ssub.s32 %s28, %s47
      %s223 = ssub.s32 %s30, %s39
      %s224 = sor.u32 %s222, %s223
      %s225 = ssub.s32 %s29, %s43
      %s226 = sor.u32 %s224, %s225
      %p227 = scmp.eq.s32.totalorder %s226, 0
      %s229 = sadd.s32 %s228, 1
      %s230 = scalar_select %p227, %s228, %s229
      %p233 = pneg %p227
      %p234 = scmp.eq.s32.totalorder %s21, 3
      %p235 = por %p233, %p234
      %p236 = scmp.ne.s32.totalorder %s228, %s231
      %p237 = scmp.eq.s32.totalorder %s21, 0
      %p238 = por %p236, %p237
      %p239 = scmp.ne.s32.totalorder %s228, %s231
      %p240 = scmp.eq.s32.totalorder %s26, 3
      %p241 = por %p239, %p240
      %p242 = scmp.ne.s32.totalorder %s231, %s232
      %p243 = scmp.eq.s32.totalorder %s26, 0
      %p244 = por %p242, %p243
      %p245 = scmp.ne.s32.totalorder %s231, %s232
      %p246 = scmp.eq.s32.totalorder %s27, 3
      %p247 = por %p245, %p246
      %p249 = scmp.ne.s32.totalorder %s232, %s248
      %p250 = scmp.eq.s32.totalorder %s27, 0
      %p251 = por %p249, %p250
      %s252 = ssub.s32 %s28, %s47
      %s253 = ssub.s32 %s30, %s39
      %s254 = sor.u32 %s252, %s253
      %s255 = ssub.s32 %s29, %s43
      %s256 = sor.u32 %s254, %s255
      %p257 = scmp.eq.s32.totalorder %s256, 0
      %s259 = sadd.s32 %s258, 1
      %s260 = scalar_select %p257, %s258, %s259
      %p263 = pneg %p257
      %p264 = scmp.eq.s32.totalorder %s21, 3
      %p265 = por %p263, %p264
      %p266 = scmp.ne.s32.totalorder %s258, %s261
      %p267 = scmp.eq.s32.totalorder %s21, 0
      %p268 = por %p266, %p267
      %p269 = scmp.ne.s32.totalorder %s258, %s261
      %p270 = scmp.eq.s32.totalorder %s26, 3
      %p271 = por %p269, %p270
      %p272 = scmp.ne.s32.totalorder %s261, %s262
      %p273 = scmp.eq.s32.totalorder %s26, 0
      %p274 = por %p272, %p273
      %p275 = scmp.ne.s32.totalorder %s261, %s262
      %p276 = scmp.eq.s32.totalorder %s27, 3
      %p277 = por %p275, %p276
      %p279 = scmp.ne.s32.totalorder %s262, %s278
      %p280 = scmp.eq.s32.totalorder %s27, 0
      %p281 = por %p279, %p280
      %p282 = scmp.le.s32.totalorder 1, %s21
      %p283 = scmp.lt.s32.totalorder %s21, 5
      %p284 = pnand %p282, %p283
      %p285 = pneg %p284
      // Predicated region
      $region9: #{tpu_custom_call.1} parent=5 // pred_check
        _
      $region10: #{tpu_custom_call.1} parent=5 // pred_check_branch
        %287 = sbr.rel (%p284) target = $region12
      $region11: #{tpu_custom_call.1} parent=5 // pred_region
        %s288 = ssub.s32 %s21, 1
        // Predicated region
        $region13: #{tpu_custom_call.1} parent=11 // pred_check
          %p289 = pneg %p146
        $region14: #{tpu_custom_call.1} parent=11 // pred_check_branch
          %291 = sbr.rel (%p289) target = $region16
        $region15: #{tpu_custom_call.1} parent=11 // pred_region
          %s292 = smul.u32 8, %s32
          %p293 = scmp.lt.s32.totalorder %s292, 7
          %s294 = scalar_select %p293, %s292, 7
          %s295 = smul.addr %s294, 8
          %s296 = scalar_lea.vmem %s3, %s295
          %s297 = smul.u32 8, %s32
        $region16: #{tpu_custom_call.1} parent=11 // pred_fallthru
          _
        // Predicated region
        $region17: #{tpu_custom_call.1} parent=11 // pred_check
          %p298 = pneg %p167
        $region18: #{tpu_custom_call.1} parent=11 // pred_check_branch
          %300 = sbr.rel (%p298) target = $region20
        $region19: #{tpu_custom_call.1} parent=11 // pred_region
          _
        $region20: #{tpu_custom_call.1} parent=11 // pred_fallthru
          _
        // Predicated region
        $region21: #{tpu_custom_call.1} parent=11 // pred_check
          %p301 = pneg %p214
        $region22: #{tpu_custom_call.1} parent=11 // pred_check_branch
          %303 = sbr.rel (%p301) target = $region24
        $region23: #{tpu_custom_call.1} parent=11 // pred_region
          _
        $region24: #{tpu_custom_call.1} parent=11 // pred_fallthru
          _
      $region12: #{tpu_custom_call.1} parent=5 // pred_fallthru
        _
      %p304 = scmp.lt.s32.totalorder %s21, 4
      // Predicated region
      $region25: #{tpu_custom_call.1} parent=5 // pred_check
        %p305 = pneg %p304
      $region26: #{tpu_custom_call.1} parent=5 // pred_check_branch
        %307 = sbr.rel (%p305) target = $region28
      $region27: #{tpu_custom_call.1} parent=5 // pred_region
        // Predicated region
        $region29: #{tpu_custom_call.1} parent=27 // pred_check
          %p308 = pneg %p62
        $region30: #{tpu_custom_call.1} parent=27 // pred_check_branch
          %310 = sbr.rel (%p308) target = $region32
        $region31: #{tpu_custom_call.1} parent=27 // pred_region
          %s311 = smul.u32 8, %s29
          %p312 = scmp.lt.s32.totalorder %s28, 1
          %s313 = scalar_select %p312, %s28, 1
          %p314 = scmp.lt.s32.totalorder %s311, 7
          %s315 = scalar_select %p314, %s311, 7
          %s316 = smul.addr %s313, 8
          %s317 = sadd.s32 %s315, %s316
          %s318 = smul.addr %s317, 4
          %s319 = scalar_lea.vmem %s0, %s318
          %s320 = smul.u32 8, %s29
        $region32: #{tpu_custom_call.1} parent=27 // pred_fallthru
          _
        // Predicated region
        $region33: #{tpu_custom_call.1} parent=27 // pred_check
          %p321 = pneg %p88
        $region34: #{tpu_custom_call.1} parent=27 // pred_check_branch
          %323 = sbr.rel (%p321) target = $region36
        $region35: #{tpu_custom_call.1} parent=27 // pred_region
          %p324 = scmp.lt.s32.totalorder %s30, 1
          %s325 = scalar_select %p324, %s30, 1
          %s326 = smul.addr %s325, 2
          %s327 = smul.addr %s326, 4
          %s328 = scalar_lea.vmem %s1, %s327
        $region36: #{tpu_custom_call.1} parent=27 // pred_fallthru
          _
        // Predicated region
        $region37: #{tpu_custom_call.1} parent=27 // pred_check
          %p329 = pneg %p114
        $region38: #{tpu_custom_call.1} parent=27 // pred_check_branch
          %331 = sbr.rel (%p329) target = $region40
        $region39: #{tpu_custom_call.1} parent=27 // pred_region
          %p332 = scmp.lt.s32.totalorder %s30, 1
          %s333 = scalar_select %p332, %s30, 1
          %s334 = smul.addr %s333, 2
          %s335 = scalar_lea.vmem %s2, %s334
        $region40: #{tpu_custom_call.1} parent=27 // pred_fallthru
          _
        // Predicated region
        $region41: #{tpu_custom_call.1} parent=27 // pred_check
          %p336 = pneg %p187
        $region42: #{tpu_custom_call.1} parent=27 // pred_check_branch
          %338 = sbr.rel (%p336) target = $region44
        $region43: #{tpu_custom_call.1} parent=27 // pred_region
          %p339 = scmp.lt.s32.totalorder %s30, 1
          %s340 = scalar_select %p339, %s30, 1
          %s341 = smul.addr %s340, 2
          %s342 = scalar_lea.vmem %s5, %s341
        $region44: #{tpu_custom_call.1} parent=27 // pred_fallthru
          _
      $region28: #{tpu_custom_call.1} parent=5 // pred_fallthru
        _
      %p343 = scmp.le.s32.totalorder 1, %s21
      %p344 = scmp.lt.s32.totalorder %s21, 5
      %p345 = pnand %p343, %p344
      %p346 = pneg %p345
      // Predicated region
      $region45: #{tpu_custom_call.1} parent=5 // pred_check
        _
      $region46: #{tpu_custom_call.1} parent=5 // pred_check_branch
        %348 = sbr.rel (%p345) target = $region48
      $region47: #{tpu_custom_call.1} parent=5 // pred_region
        %s349 = ssub.s32 %s21, 1
        %s350 = smul.u32 8, %s32
        %p351 = scmp.lt.s32.totalorder %s31, 1
        %s352 = scalar_select %p351, %s31, 1
        %p353 = scmp.lt.s32.totalorder %s350, 7
        %s354 = scalar_select %p353, %s350, 7
        %s355 = smul.addr %s352, 8
        %s356 = sadd.s32 %s354, %s355
        %s357 = smul.addr %s356, 4
        %s358 = scalar_lea.vmem %s0, %s357
        %p359 = pneg %p68
        %p360 = pneg %p65
        %p361 = scmp.lt.s32.totalorder %s33, 1
        %s362 = scalar_select %p361, %s33, 1
        %s363 = smul.addr %s362, 2
        %s364 = smul.addr %s363, 4
        %s365 = scalar_lea.vmem %s1, %s364
        %p366 = pneg %p94
        %p367 = pneg %p91
        %p368 = scmp.lt.s32.totalorder %s33, 1
        %s369 = scalar_select %p368, %s33, 1
        %s370 = smul.addr %s369, 2
        %s371 = scalar_lea.vmem %s2, %s370
        %p372 = pneg %p120
        %p373 = pneg %p117
        %s374 = smul.u32 8, %s32
        %p375 = scmp.lt.s32.totalorder %s374, 7
        %s376 = scalar_select %p375, %s374, 7
        %s377 = smul.addr %s376, 8
        %s378 = scalar_lea.vmem %s3, %s377
        %p379 = pneg %p146
        %p380 = pneg %p143
        %p381 = pneg %p167
        %p382 = pneg %p164
        %p383 = scmp.lt.s32.totalorder %s33, 1
        %s384 = scalar_select %p383, %s33, 1
        %s385 = smul.addr %s384, 2
        %s386 = scalar_lea.vmem %s5, %s385
        %p387 = pneg %p193
        %p388 = pneg %p190
        %p389 = pneg %p214
        %p390 = pneg %p211
        %p391 = pneg %p244
        %p392 = pneg %p241
        %s393 = sand.u32 %s231, 1
        %s394 = scalar_lea.sflag [#allocation3], %s393
        %s395 = sand.u32 %s231, 1
        %s396 = smul.addr %s395, 64
        %s397 = scalar_lea.vmem [#allocation2], %s396
        %p398 = pneg %p274
        %p399 = pneg %p271
        %s400 = sand.u32 %s261, 1
        %s401 = scalar_lea.sflag [#allocation5], %s400
        %s402 = sand.u32 %s261, 1
        %s403 = smul.addr %s402, 128
        %s404 = scalar_lea.vmem [#allocation4], %s403
        %s405 = smul.u32 8, %s32
        %p406 = scmp.lt.s32.totalorder %s31, 1
        %s407 = scalar_select %p406, %s31, 1
        %p408 = scmp.lt.s32.totalorder %s405, 7
        %s409 = scalar_select %p408, %s405, 7
        %s410 = smul.addr %s407, 8
        %s411 = sadd.s32 %s409, %s410
        %s412 = smul.addr %s411, 4
        %s413 = scalar_lea.vmem %s0, %s412
        %s414 = smul.u32 8, %s32
        %p415 = scmp.lt.s32.totalorder %s33, 1
        %s416 = scalar_select %p415, %s33, 1
        %s417 = smul.addr %s416, 2
        %s418 = smul.addr %s417, 4
        %s419 = scalar_lea.vmem %s1, %s418
        %p420 = scmp.lt.s32.totalorder %s33, 1
        %s421 = scalar_select %p420, %s33, 1
        %s422 = smul.addr %s421, 2
        %s423 = scalar_lea.vmem %s2, %s422
        %s424 = smul.u32 8, %s32
        %p425 = scmp.lt.s32.totalorder %s424, 7
        %s426 = scalar_select %p425, %s424, 7
        %s427 = smul.addr %s426, 8
        %s428 = scalar_lea.vmem %s3, %s427
        %s429 = smul.u32 8, %s32
        %p430 = scmp.lt.s32.totalorder %s33, 1
        %s431 = scalar_select %p430, %s33, 1
        %s432 = smul.addr %s431, 2
        %s433 = scalar_lea.vmem %s5, %s432
        %s434 = smul.u32 8, %s32
        %s435 = smul.u32 8, %s32
        %v437 = vld [vmem:[%s413] sm:$0xf]
        %v438 = vld [vmem:[%s413 + $0x4] sm:$0xf]
        %v439 = vld [vmem:[%s413 + $0x8] sm:$0xf]
        %v440 = vld [vmem:[%s413 + $0xc] sm:$0xf]
        %v441 = vld [vmem:[%s413 + $0x10] sm:$0xf]
        %v442 = vld [vmem:[%s413 + $0x14] sm:$0xf]
        %v443 = vld [vmem:[%s413 + $0x18] sm:$0xf]
        %v444 = vld [vmem:[%s413 + $0x1c] sm:$0xf]
        %v445 = vld [vmem:[%s419] sm:$0xff]
        %v446 = vld [vmem:[%s423] sm:$0x3]
        %v448 = vperm.slane %v446, 0
        %v449 = vperm.slane %v446, 1
        %v460 = vunpack.c.l.b16 %v437
        %v461 = vunpack.c.l.b16 %v438
        %v462 = vunpack.c.l.b16 %v439
        %v463 = vunpack.c.l.b16 %v440
        %v464 = vunpack.c.l.b16 %v441
        %v465 = vunpack.c.l.b16 %v442
        %v466 = vunpack.c.l.b16 %v443
        %v467 = vunpack.c.l.b16 %v444
        %v468 = vpack.c.b16 %v461, %v460
        %v469 = vpack.c.b16 %v463, %v462
        %v470 = vpack.c.b16 %v465, %v464
        %v471 = vpack.c.b16 %v467, %v466
        %v473 = vunpack.c.l.b16 %v445
        %v474 = vunpack.c.h.b16 %v445
        %v475 = vpack.c.b16 %v473, %v473
        %v476 = vpack.c.b16 %v474, %v474
        %vm477 = vcmask 64512
        %v479 = vsel %vm477, %v468, 0
        %v482 = vsel %vm477, %v469, 0
        %v485 = vsel %vm477, %v470, 0
        %v488 = vsel %vm477, %v471, 0
        %vm490 = vcmask 1043456
        %v492 = vsel %vm490, %v475, 0
        %v495 = vsel %vm490, %v476, 0
        %497 = vmatpush.bf16.msra.mxu0 0
        %498 = vmatpush.bf16.msra.mxu0 0
        %499 = vmatpush.bf16.msra.mxu0 0
        %500 = vmatpush.bf16.msra.mxu0 0
        %501 = vmatpush.bf16.msra.mxu0 0
        %502 = vmatpush.bf16.msra.mxu0 0
        %503 = vmatpush.bf16.msra.mxu0 0
        %504 = vmatpush.bf16.msra.mxu0 %v492
        %505 = vmatmul.bf16.gmra.mxu0 %v479
        %v506 = vpop.f32.mrf.mxu0
        %v507 = vadd.f32 %v448, %v506
        %v508 = vpop.f32.mrf.mxu0
        %v509 = vadd.f32 %v448, %v508
        %510 = vmatmul.bf16.gmra.mxu0 %v482
        %v511 = vpop.f32.mrf.mxu0
        %v512 = vadd.f32 %v448, %v511
        %v513 = vpop.f32.mrf.mxu0
        %v514 = vadd.f32 %v448, %v513
        %515 = vmatmul.bf16.gmra.mxu0 %v485
        %v516 = vpop.f32.mrf.mxu0
        %v517 = vadd.f32 %v448, %v516
        %v518 = vpop.f32.mrf.mxu0
        %v519 = vadd.f32 %v448, %v518
        %520 = vmatmul.bf16.gmra.mxu0 %v488
        %v521 = vpop.f32.mrf.mxu0
        %v522 = vadd.f32 %v448, %v521
        %v523 = vpop.f32.mrf.mxu0
        %v524 = vadd.f32 %v448, %v523
        %525 = vdwg.mxu0
        %526 = vmatpush.bf16.msra.mxu0 0
        %527 = vmatpush.bf16.msra.mxu0 0
        %528 = vmatpush.bf16.msra.mxu0 0
        %529 = vmatpush.bf16.msra.mxu0 0
        %530 = vmatpush.bf16.msra.mxu0 0
        %531 = vmatpush.bf16.msra.mxu0 0
        %532 = vmatpush.bf16.msra.mxu0 0
        %533 = vmatpush.bf16.msra.mxu0 %v495
        %534 = vmatmul.bf16.gmra.mxu0 %v479
        %v535 = vpop.f32.mrf.mxu0
        %v536 = vadd.f32 %v449, %v535
        %v537 = vpop.f32.mrf.mxu0
        %v538 = vadd.f32 %v449, %v537
        %539 = vmatmul.bf16.gmra.mxu0 %v482
        %v540 = vpop.f32.mrf.mxu0
        %v541 = vadd.f32 %v449, %v540
        %v542 = vpop.f32.mrf.mxu0
        %v543 = vadd.f32 %v449, %v542
        %544 = vmatmul.bf16.gmra.mxu0 %v485
        %v545 = vpop.f32.mrf.mxu0
        %v546 = vadd.f32 %v449, %v545
        %v547 = vpop.f32.mrf.mxu0
        %v548 = vadd.f32 %v449, %v547
        %549 = vmatmul.bf16.gmra.mxu0 %v488
        %v550 = vpop.f32.mrf.mxu0
        %v551 = vadd.f32 %v449, %v550
        %v552 = vpop.f32.mrf.mxu0
        %v553 = vadd.f32 %v449, %v552
        %554 = vdwg.mxu0
        %v555 = vpack.c.bf16 %v536, %v507
        %v556 = vpack.c.bf16 %v538, %v509
        %v557 = vpack.c.bf16 %v541, %v512
        %v558 = vpack.c.bf16 %v543, %v514
        %v559 = vpack.c.bf16 %v546, %v517
        %v560 = vpack.c.bf16 %v548, %v519
        %v561 = vpack.c.bf16 %v551, %v522
        %v562 = vpack.c.bf16 %v553, %v524
        %vm563 = vcmask 490500
        %vm564 = vmor %vm563, %vm490
        %565 = vst.msk [vmem:[%s397] sm:$0xff] %vm564, %v555
        %566 = vst.msk [vmem:[%s397 + $0x8] sm:$0xff] %vm564, %v556
        %567 = vst.msk [vmem:[%s397 + $0x10] sm:$0xff] %vm564, %v557
        %568 = vst.msk [vmem:[%s397 + $0x18] sm:$0xff] %vm564, %v558
        %569 = vst.msk [vmem:[%s397 + $0x20] sm:$0xff] %vm564, %v559
        %570 = vst.msk [vmem:[%s397 + $0x28] sm:$0xff] %vm564, %v560
        %571 = vst.msk [vmem:[%s397 + $0x30] sm:$0xff] %vm564, %v561
        %572 = vst.msk [vmem:[%s397 + $0x38] sm:$0xff] %vm564, %v562
        %v573 = vmul.f32 %v507, 0.5
        %v574 = vmul.f32 %v536, 0.5
        %v575 = vmul.f32 %v509, 0.5
        %v576 = vmul.f32 %v538, 0.5
        %v577 = vmul.f32 %v512, 0.5
        %v578 = vmul.f32 %v541, 0.5
        %v579 = vmul.f32 %v514, 0.5
        %v580 = vmul.f32 %v543, 0.5
        %v581 = vmul.f32 %v517, 0.5
        %v582 = vmul.f32 %v546, 0.5
        %v583 = vmul.f32 %v519, 0.5
        %v584 = vmul.f32 %v548, 0.5
        %v585 = vmul.f32 %v522, 0.5
        %v586 = vmul.f32 %v551, 0.5
        %v587 = vmul.f32 %v524, 0.5
        %v588 = vmul.f32 %v553, 0.5
        %v589 = vtanh.pop %v573
        %v590 = vtanh.pop %v574
        %v591 = vtanh.pop %v575
        %v592 = vtanh.pop %v576
        %v593 = vtanh.pop %v577
        %v594 = vtanh.pop %v578
        %v595 = vtanh.pop %v579
        %v596 = vtanh.pop %v580
        %v597 = vtanh.pop %v581
        %v598 = vtanh.pop %v582
        %v599 = vtanh.pop %v583
        %v600 = vtanh.pop %v584
        %v601 = vtanh.pop %v585
        %v602 = vtanh.pop %v586
        %v603 = vtanh.pop %v587
        %v604 = vtanh.pop %v588
        %v605 = vmul.f32 %v589, 0.5
        %v606 = vmul.f32 %v590, 0.5
        %v607 = vmul.f32 %v591, 0.5
        %v608 = vmul.f32 %v592, 0.5
        %v609 = vmul.f32 %v593, 0.5
        %v610 = vmul.f32 %v594, 0.5
        %v611 = vmul.f32 %v595, 0.5
        %v612 = vmul.f32 %v596, 0.5
        %v613 = vmul.f32 %v597, 0.5
        %v614 = vmul.f32 %v598, 0.5
        %v615 = vmul.f32 %v599, 0.5
        %v616 = vmul.f32 %v600, 0.5
        %v617 = vmul.f32 %v601, 0.5
        %v618 = vmul.f32 %v602, 0.5
        %v619 = vmul.f32 %v603, 0.5
        %v620 = vmul.f32 %v604, 0.5
        %v621 = vadd.f32 %v605, 0.5
        %v622 = vadd.f32 %v606, 0.5
        %v623 = vadd.f32 %v607, 0.5
        %v624 = vadd.f32 %v608, 0.5
        %v625 = vadd.f32 %v609, 0.5
        %v626 = vadd.f32 %v610, 0.5
        %v627 = vadd.f32 %v611, 0.5
        %v628 = vadd.f32 %v612, 0.5
        %v629 = vadd.f32 %v613, 0.5
        %v630 = vadd.f32 %v614, 0.5
        %v631 = vadd.f32 %v615, 0.5
        %v632 = vadd.f32 %v616, 0.5
        %v633 = vadd.f32 %v617, 0.5
        %v634 = vadd.f32 %v618, 0.5
        %v635 = vadd.f32 %v619, 0.5
        %v636 = vadd.f32 %v620, 0.5
        %v637 = vld [vmem:[%s6] sm:$0x3]
        %v638 = vld [vmem:[%s428] sm:$0xff]
        %v639 = vld [vmem:[%s428 + $0x8] sm:$0xff]
        %v640 = vld [vmem:[%s428 + $0x10] sm:$0xff]
        %v641 = vld [vmem:[%s428 + $0x18] sm:$0xff]
        %v642 = vld [vmem:[%s428 + $0x20] sm:$0xff]
        %v643 = vld [vmem:[%s428 + $0x28] sm:$0xff]
        %v644 = vld [vmem:[%s428 + $0x30] sm:$0xff]
        %v645 = vld [vmem:[%s428 + $0x38] sm:$0xff]
        %vm646 = vcmp.eq.s32.totalorder %v637, 0
        %vm647 = vcmp.eq.s32.totalorder %v637, 1
        %v648 = vsel %vm647, 1, 0
        %v649 = vperm.slane %v648, 0
        %v650 = vperm.slane %v648, 1
        %vm651 = vcmp.eq.s32.totalorder %v649, 1
        %vm652 = vcmp.eq.s32.totalorder %v650, 1
        %654 = vset.pattern.permute.xlu0 1
        %655 = vperm.xlu0 %654, %v638
        %v656 = vpop.permute.xlu0 %655
        %659 = vset.pattern.permute.xlu0 1
        %660 = vperm.xlu0 %659, %v639
        %v661 = vpop.permute.xlu0 %660
        %664 = vset.pattern.permute.xlu0 1
        %665 = vperm.xlu0 %664, %v640
        %v666 = vpop.permute.xlu0 %665
        %669 = vset.pattern.permute.xlu0 1
        %670 = vperm.xlu0 %669, %v641
        %v671 = vpop.permute.xlu0 %670
        %674 = vset.pattern.permute.xlu0 1
        %675 = vperm.xlu0 %674, %v642
        %v676 = vpop.permute.xlu0 %675
        %679 = vset.pattern.permute.xlu0 1
        %680 = vperm.xlu0 %679, %v643
        %v681 = vpop.permute.xlu0 %680
        %684 = vset.pattern.permute.xlu0 1
        %685 = vperm.xlu0 %684, %v644
        %v686 = vpop.permute.xlu0 %685
        %689 = vset.pattern.permute.xlu0 1
        %690 = vperm.xlu0 %689, %v645
        %v691 = vpop.permute.xlu0 %690
        %v693 = vsel %vm651, %v656, 0.0
        %v694 = vsel %vm652, %v656, 0.0
        %v695 = vsel %vm651, %v661, 0.0
        %v696 = vsel %vm652, %v661, 0.0
        %v697 = vsel %vm651, %v666, 0.0
        %v698 = vsel %vm652, %v666, 0.0
        %v699 = vsel %vm651, %v671, 0.0
        %v700 = vsel %vm652, %v671, 0.0
        %v701 = vsel %vm651, %v676, 0.0
        %v702 = vsel %vm652, %v676, 0.0
        %v703 = vsel %vm651, %v681, 0.0
        %v704 = vsel %vm652, %v681, 0.0
        %v705 = vsel %vm651, %v686, 0.0
        %v706 = vsel %vm652, %v686, 0.0
        %v707 = vsel %vm651, %v691, 0.0
        %v708 = vsel %vm652, %v691, 0.0
        %v709 = vsel %vm646, 1, 0
        %v710 = vperm.slane %v709, 0
        %v711 = vperm.slane %v709, 1
        %vm712 = vcmp.eq.s32.totalorder %v710, 1
        %vm713 = vcmp.eq.s32.totalorder %v711, 1
        %714 = vset.pattern.permute.xlu0 0
        %715 = vperm.xlu0 %714, %v638
        %v716 = vpop.permute.xlu0 %715
        %718 = vset.pattern.permute.xlu0 0
        %719 = vperm.xlu0 %718, %v639
        %v720 = vpop.permute.xlu0 %719
        %722 = vset.pattern.permute.xlu0 0
        %723 = vperm.xlu0 %722, %v640
        %v724 = vpop.permute.xlu0 %723
        %726 = vset.pattern.permute.xlu0 0
        %727 = vperm.xlu0 %726, %v641
        %v728 = vpop.permute.xlu0 %727
        %730 = vset.pattern.permute.xlu0 0
        %731 = vperm.xlu0 %730, %v642
        %v732 = vpop.permute.xlu0 %731
        %734 = vset.pattern.permute.xlu0 0
        %735 = vperm.xlu0 %734, %v643
        %v736 = vpop.permute.xlu0 %735
        %738 = vset.pattern.permute.xlu0 0
        %739 = vperm.xlu0 %738, %v644
        %v740 = vpop.permute.xlu0 %739
        %742 = vset.pattern.permute.xlu0 0
        %743 = vperm.xlu0 %742, %v645
        %v744 = vpop.permute.xlu0 %743
        %v746 = vsel %vm712, %v716, %v693
        %v747 = vsel %vm713, %v716, %v694
        %v748 = vsel %vm712, %v720, %v695
        %v749 = vsel %vm713, %v720, %v696
        %v750 = vsel %vm712, %v724, %v697
        %v751 = vsel %vm713, %v724, %v698
        %v752 = vsel %vm712, %v728, %v699
        %v753 = vsel %vm713, %v728, %v700
        %v754 = vsel %vm712, %v732, %v701
        %v755 = vsel %vm713, %v732, %v702
        %v756 = vsel %vm712, %v736, %v703
        %v757 = vsel %vm713, %v736, %v704
        %v758 = vsel %vm712, %v740, %v705
        %v759 = vsel %vm713, %v740, %v706
        %v760 = vsel %vm712, %v744, %v707
        %v761 = vsel %vm713, %v744, %v708
        %v762 = vld [vmem:[%s4] sm:$0x3]
        %v763 = vld [vmem:[%s433] sm:$0x3]
        %v765 = vperm.slane %v763, 0
        %v766 = vperm.slane %v763, 1
        %v769 = vmul.f32 %v621, %v765
        %v770 = vmul.f32 %v622, %v766
        %v771 = vmul.f32 %v623, %v765
        %v772 = vmul.f32 %v624, %v766
        %v773 = vmul.f32 %v625, %v765
        %v774 = vmul.f32 %v626, %v766
        %v775 = vmul.f32 %v627, %v765
        %v776 = vmul.f32 %v628, %v766
        %v777 = vmul.f32 %v629, %v765
        %v778 = vmul.f32 %v630, %v766
        %v779 = vmul.f32 %v631, %v765
        %v780 = vmul.f32 %v632, %v766
        %v781 = vmul.f32 %v633, %v765
        %v782 = vmul.f32 %v634, %v766
        %v783 = vmul.f32 %v635, %v765
        %v784 = vmul.f32 %v636, %v766
        %v786 = vperm.slane %v762, 0
        %v787 = vperm.slane %v762, 1
        %v790 = vadd.f32 %v786, %v769
        %v791 = vadd.f32 %v787, %v770
        %v792 = vadd.f32 %v786, %v771
        %v793 = vadd.f32 %v787, %v772
        %v794 = vadd.f32 %v786, %v773
        %v795 = vadd.f32 %v787, %v774
        %v796 = vadd.f32 %v786, %v775
        %v797 = vadd.f32 %v787, %v776
        %v798 = vadd.f32 %v786, %v777
        %v799 = vadd.f32 %v787, %v778
        %v800 = vadd.f32 %v786, %v779
        %v801 = vadd.f32 %v787, %v780
        %v802 = vadd.f32 %v786, %v781
        %v803 = vadd.f32 %v787, %v782
        %v804 = vadd.f32 %v786, %v783
        %v805 = vadd.f32 %v787, %v784
        %v806 = vmul.f32 %v621, %v790
        %v807 = vmul.f32 %v622, %v791
        %v808 = vmul.f32 %v623, %v792
        %v809 = vmul.f32 %v624, %v793
        %v810 = vmul.f32 %v625, %v794
        %v811 = vmul.f32 %v626, %v795
        %v812 = vmul.f32 %v627, %v796
        %v813 = vmul.f32 %v628, %v797
        %v814 = vmul.f32 %v629, %v798
        %v815 = vmul.f32 %v630, %v799
        %v816 = vmul.f32 %v631, %v800
        %v817 = vmul.f32 %v632, %v801
        %v818 = vmul.f32 %v633, %v802
        %v819 = vmul.f32 %v634, %v803
        %v820 = vmul.f32 %v635, %v804
        %v821 = vmul.f32 %v636, %v805
        %v822 = vadd.f32 %v806, %v746
        %v823 = vadd.f32 %v807, %v747
        %v824 = vadd.f32 %v808, %v748
        %v825 = vadd.f32 %v809, %v749
        %v826 = vadd.f32 %v810, %v750
        %v827 = vadd.f32 %v811, %v751
        %v828 = vadd.f32 %v812, %v752
        %v829 = vadd.f32 %v813, %v753
        %v830 = vadd.f32 %v814, %v754
        %v831 = vadd.f32 %v815, %v755
        %v832 = vadd.f32 %v816, %v756
        %v833 = vadd.f32 %v817, %v757
        %v834 = vadd.f32 %v818, %v758
        %v835 = vadd.f32 %v819, %v759
        %v836 = vadd.f32 %v820, %v760
        %v837 = vadd.f32 %v821, %v761
        %838 = vst [vmem:[%s404] sm:$0xff] %v822
        %vm839 = vcmask 490496
        %840 = vst.msk [vmem:[%s404 + $0x8] sm:$0xff] %vm839, %v823
        %841 = vst [vmem:[%s404 + $0x10] sm:$0xff] %v824
        %842 = vst.msk [vmem:[%s404 + $0x18] sm:$0xff] %vm839, %v825
        %843 = vst [vmem:[%s404 + $0x20] sm:$0xff] %v826
        %844 = vst.msk [vmem:[%s404 + $0x28] sm:$0xff] %vm839, %v827
        %845 = vst [vmem:[%s404 + $0x30] sm:$0xff] %v828
        %846 = vst.msk [vmem:[%s404 + $0x38] sm:$0xff] %vm839, %v829
        %847 = vst [vmem:[%s404 + $0x40] sm:$0xff] %v830
        %848 = vst.msk [vmem:[%s404 + $0x48] sm:$0xff] %vm839, %v831
        %849 = vst [vmem:[%s404 + $0x50] sm:$0xff] %v832
        %850 = vst.msk [vmem:[%s404 + $0x58] sm:$0xff] %vm839, %v833
        %851 = vst [vmem:[%s404 + $0x60] sm:$0xff] %v834
        %852 = vst.msk [vmem:[%s404 + $0x68] sm:$0xff] %vm839, %v835
        %853 = vst [vmem:[%s404 + $0x70] sm:$0xff] %v836
        %854 = vst.msk [vmem:[%s404 + $0x78] sm:$0xff] %vm839, %v837
        %s855 = sand.u32 %s231, 1
        %s856 = scalar_lea.sflag [#allocation3], %s855
        %s857 = sand.u32 %s231, 1
        %s858 = smul.addr %s857, 64
        %s859 = scalar_lea.vmem [#allocation2], %s858
        %s860 = sand.u32 %s261, 1
        %s861 = scalar_lea.sflag [#allocation5], %s860
        %s862 = sand.u32 %s261, 1
        %s863 = smul.addr %s862, 128
        %s864 = scalar_lea.vmem [#allocation4], %s863
        // Predicated region
        $region49: #{tpu_custom_call.1} parent=47 // pred_check
          %p865 = pneg %p241
        $region50: #{tpu_custom_call.1} parent=47 // pred_check_branch
          %867 = sbr.rel (%p865) target = $region52
        $region51: #{tpu_custom_call.1} parent=47 // pred_region
          %s868 = smul.u32 8, %s32
          %870 = vsyncadd %s856, 0
          %s871 = smul.addr %s868, 2
          %s872 = smul.addr %s33, 16
          %s873 = sadd.s32 %s871, %s872
          %s874 = smul.addr %s31, 32
          %s875 = sadd.s32 %s873, %s874
          %s876 = smul.addr %s875, 4
          %s877 = scalar_lea.hbm %s7, %s876
          %s878 = sshll.u32 %s859, 4
          %s879 = int_to_ptr.vmem [resolvable:$true] %s878
          %s880 = sshll.u32 %s877, 4
          %s881 = int_to_ptr.hbm [resolvable:$true] %s880
          %886 = dma.vmem_to_hbm [thread:$0]  %s879, 1024, %s881, %s856, 128, 128, 8
        $region52: #{tpu_custom_call.1} parent=47 // pred_fallthru
          _
        // Predicated region
        $region53: #{tpu_custom_call.1} parent=47 // pred_check
          %p887 = pneg %p271
        $region54: #{tpu_custom_call.1} parent=47 // pred_check_branch
          %889 = sbr.rel (%p887) target = $region56
        $region55: #{tpu_custom_call.1} parent=47 // pred_region
          %s890 = smul.u32 8, %s32
          %892 = vsyncadd %s861, 0
          %s893 = smul.addr %s890, 2
          %s894 = smul.addr %s33, 16
          %s895 = sadd.s32 %s893, %s894
          %s896 = smul.addr %s31, 32
          %s897 = sadd.s32 %s895, %s896
          %s898 = smul.addr %s897, 8
          %s899 = scalar_lea.hbm %s8, %s898
          %s900 = sshll.u32 %s864, 4
          %s901 = int_to_ptr.vmem [resolvable:$true] %s900
          %s902 = sshll.u32 %s899, 4
          %s903 = int_to_ptr.hbm [resolvable:$true] %s902
          %908 = dma.vmem_to_hbm [thread:$0]  %s901, 2048, %s903, %s861, 256, 256, 16
        $region56: #{tpu_custom_call.1} parent=47 // pred_fallthru
          _
      $region48: #{tpu_custom_call.1} parent=5 // pred_fallthru
        _
      %p909 = scmp.le.s32.totalorder 2, %s21
      // Predicated region
      $region57: #{tpu_custom_call.1} parent=5 // pred_check
        %p910 = pneg %p909
      $region58: #{tpu_custom_call.1} parent=5 // pred_check_branch
        %912 = sbr.rel (%p910) target = $region60
      $region59: #{tpu_custom_call.1} parent=5 // pred_region
        %s913 = ssub.s32 %s21, 2
        // Predicated region
        $region61: #{tpu_custom_call.1} parent=59 // pred_check
          %p914 = pneg %p247
        $region62: #{tpu_custom_call.1} parent=59 // pred_check_branch
          %916 = sbr.rel (%p914) target = $region64
        $region63: #{tpu_custom_call.1} parent=59 // pred_region
          %s917 = sand.u32 %s232, 1
          %s918 = scalar_lea.sflag [#allocation3], %s917
          %s919 = sand.u32 %s232, 1
          %s920 = smul.addr %s919, 64
          %s921 = scalar_lea.vmem [#allocation2], %s920
          %923 = dma.done %s918, 1024
        $region64: #{tpu_custom_call.1} parent=59 // pred_fallthru
          _
        // Predicated region
        $region65: #{tpu_custom_call.1} parent=59 // pred_check
          %p924 = pneg %p277
        $region66: #{tpu_custom_call.1} parent=59 // pred_check_branch
          %926 = sbr.rel (%p924) target = $region68
        $region67: #{tpu_custom_call.1} parent=59 // pred_region
          %s927 = sand.u32 %s262, 1
          %s928 = scalar_lea.sflag [#allocation5], %s927
          %s929 = sand.u32 %s262, 1
          %s930 = smul.addr %s929, 128
          %s931 = scalar_lea.vmem [#allocation4], %s930
          %933 = dma.done %s928, 2048
        $region68: #{tpu_custom_call.1} parent=59 // pred_fallthru
          _
      $region60: #{tpu_custom_call.1} parent=5 // pred_fallthru
        _
    $region6: #{tpu_custom_call.1} parent=1 // loop_footer
      %s25 = sadd.s32 1, %s21
    $region7: #{tpu_custom_call.1} parent=1 // loop_footer_branch
      %20 = sbr.rel target = $region3
    $region8: #{tpu_custom_call.1} parent=1 // loop_exit
      _
    %934 = vsyncpa [#allocation3], 1
    %s935 = scalar_lea.sflag [#allocation3], 1
    %936 = vsyncpa %s935, 1
    %937 = vsyncpa [#allocation5], 1
    %s938 = scalar_lea.sflag [#allocation5], 1
    %939 = vsyncpa %s938, 1

</llo_original>
